<compile_context>
chip_gen: v7x
topology: tpu7x:2x2x1
jax: 0.10.0
libtpu: 0.0.40
codegen_flags: <defaults>
</compile_context>

<pallas_src>
import functools
import math

import jax
import jax.numpy as jnp
import numpy as np
from jax.experimental import pallas as pl
from jax.experimental.pallas import tpu as pltpu


def _round_up(x, m):
    return (x + m - 1) // m * m


# ---------------------------------------------------------------------------
# Setup-time weight quantization (mirrors torchao `_quantize`, signed path).
# ---------------------------------------------------------------------------
def quantize_weights(vals, group_size, nbit, has_weight_zeros):
    qmin = -(1 << (nbit - 1))
    qmax = (1 << (nbit - 1)) - 1
    n, k = vals.shape
    g = vals.reshape(-1, group_size)
    vmins = jnp.min(g, axis=1)
    vmaxs = jnp.max(g, axis=1)
    scales = (vmaxs - vmins) / (qmax - qmin)
    scales_safe = jnp.where(scales == 0, 1.0, scales)  # guard constant groups
    if has_weight_zeros:
        zeros = qmin - jnp.round(vmins / scales_safe)
    else:
        zeros = jnp.zeros_like(scales)
    q = jnp.clip(jnp.round(g / scales_safe[:, None] + zeros[:, None]), qmin, qmax)
    return (
        q.reshape(n, k).astype(jnp.int8),               # int8 storage
        scales.reshape(n, -1).astype(jnp.float32),       # (n, k // group_size)
        zeros.reshape(n, -1).astype(jnp.float32),        # (n, k // group_size)
    )


# ---------------------------------------------------------------------------
# Weight packing: transpose to (k, n), pad to tile multiples, pick tile sizes.
# Defaults are sized for v7x's 64 MiB VMEM / 32 MiB scoped default with large
# headroom (int8 weight tile 1024x256 = 256 KiB); v5e/v6e can pass larger.
# ---------------------------------------------------------------------------
def pack_weights(weight_qvals, weight_scales, weight_zeros, group_size,
                 tn=256, tk=1024):
    n, k = weight_qvals.shape
    assert k % group_size == 0, "group_size must divide k"
    assert group_size % 8 == 0, "group_size must be a multiple of 8"

    # n tile: multiple of 128 so the output store is lane-dense; prefer a tile
    # that divides the 128-padded n exactly (no extra padding waste).
    n_pad128 = _round_up(n, 128)
    for cand in (tn, 256, 128):
        if cand <= n_pad128 and n_pad128 % cand == 0:
            tn = cand
            break
    else:
        tn = 128
    n_pad = _round_up(n, tn)

    # k tile: multiple of both group_size and 128, unless one tile covers k.
    if k <= tk:
        tk = k
    else:
        step = group_size * 128 // math.gcd(group_size, 128)
        tk = _round_up(tk, step)
    k_pad = _round_up(k, tk)

    G = k // group_size
    G_pad = k_pad // group_size
    gpb = tk // group_size                      # k-groups per K tile

    # Scales/zeros can be tiled per K-block iff the block's sublane extent is
    # either a multiple of 8 or the full group axis (single K tile).
    scales_blocked = (gpb % 8 == 0) or (gpb == G_pad)

    # (k, n) int8 weights; padded regions have q=0, scale=0, zero=0 -> wdq=0.
    wq_t = jnp.zeros((k_pad, n_pad), jnp.int8).at[:k, :n].set(
        weight_qvals.T.astype(jnp.int8))
    ws_t = jnp.zeros((G_pad, n_pad), jnp.float32).at[:G, :n].set(
        weight_scales.astype(jnp.float32).T)
    wz_t = jnp.zeros((G_pad, n_pad), jnp.float32).at[:G, :n].set(
        weight_zeros.astype(jnp.float32).T)

    return dict(wq_t=wq_t, ws_t=ws_t, wz_t=wz_t, n=n, k=k,
                group_size=group_size, tn=tn, tk=tk,
                scales_blocked=scales_blocked)


# ---------------------------------------------------------------------------
# Pass 1: dynamic per-row int8 asymmetric activation quant/dequant -> bf16.
# Per-row scale needs a full-k reduction, so it runs tiled over rows only.
# ---------------------------------------------------------------------------
def _act_quant_kernel(x_ref, xdq_ref):
    x = x_ref[...]                                     # (tm, k) f32
    row_min = jnp.min(x, axis=1, keepdims=True)
    row_max = jnp.max(x, axis=1, keepdims=True)
    scale = (row_max - row_min) * (1.0 / 255.0)        # qmax - qmin = 255
    safe = jnp.where(scale == 0.0, 1.0, scale)         # guard constant rows
    inv = 1.0 / safe                                   # one divide, reused
    zero = -128.0 - jnp.round(row_min * inv)           # qmin - round(vmin/s)
    xq = jnp.clip(jnp.round(x * inv + zero), -128.0, 127.0)
    xdq_ref[...] = ((xq - zero) * scale).astype(xdq_ref.dtype)


# ---------------------------------------------------------------------------
# Pass 2: tiled (M, N, K) matmul; int8 weight tile dequantized per k-group to
# bf16 inside the kernel, bf16 x bf16 MXU dot with f32 accumulation.
# ---------------------------------------------------------------------------
def _wdq_matmul_kernel(xdq_ref, wq_ref, ws_ref, wz_ref, o_ref, acc_ref, *,
                       group_size, scales_blocked):
    kk = pl.program_id(2)

    @pl.when(kk == 0)
    def _():
        acc_ref[...] = jnp.zeros_like(acc_ref)

    tk, tn = wq_ref.shape
    gpb = tk // group_size                             # k-groups in this tile

    # Per-group scales/zeros for this k tile: (gpb, tn).
    if scales_blocked:
        ws = ws_ref[...]
        wz = wz_ref[...]
    else:
        start = pl.multiple_of(kk * gpb, gpb)
        ws = ws_ref[pl.ds(start, gpb), :]
        wz = wz_ref[pl.ds(start, gpb), :]

    # Dequant: (q - zero) * scale, grouping along the sublane (k) axis so the
    # lane dim stays untouched (no cross-lane relayout).
    wq = wq_ref[...].astype(jnp.float32).reshape(gpb, group_size, tn)
    wdq = ((wq - wz[:, None, :]) * ws[:, None, :]).reshape(tk, tn)

    acc_ref[...] += jnp.dot(xdq_ref[...], wdq.astype(jnp.bfloat16),
                            preferred_element_type=jnp.float32)

    @pl.when(kk == pl.num_programs(2) - 1)
    def _():
        o_ref[...] = acc_ref[...]


# ---------------------------------------------------------------------------
# Forward: equivalent of _Int8DynActIntxWeightQuantizedLinearFallback.forward.
# ---------------------------------------------------------------------------
def int8_dynact_intx_weight_linear(x, packed):
    wq_t, ws_t, wz_t = packed["wq_t"], packed["ws_t"], packed["wz_t"]
    n, k, group_size = packed["n"], packed["k"], packed["group_size"]
    tn, tk = packed["tn"], packed["tk"]
    scales_blocked = packed["scales_blocked"]
    k_pad, n_pad = wq_t.shape
    G_pad = ws_t.shape[0]
    gpb = tk // group_size

    assert x.ndim >= 2 and x.shape[-1] == k
    lead = x.shape[:-1]                                # (..., m)

    # Flatten all leading dims (batch * m) into rows; activation quant is
    # per-row with group_size == k, so this is semantics-preserving.
    x_flat = x.reshape(-1, k).astype(jnp.float32)
    M = x_flat.shape[0]
    tm = 128 if M >= 128 else _round_up(M, 8)
    M_pad = _round_up(M, tm)
    if M_pad != M:
        x_flat = jnp.pad(x_flat, ((0, M_pad - M), (0, 0)))

    # --- Pass 1: dynamic activation quant/dequant -> bf16 -------------------
    xdq = pl.pallas_call(
        _act_quant_kernel,
        out_shape=jax.ShapeDtypeStruct((M_pad, k), jnp.bfloat16),
        grid_spec=pltpu.PrefetchScalarGridSpec(
            num_scalar_prefetch=0,
            grid=(M_pad // tm,),
            in_specs=[pl.BlockSpec((tm, k), lambda i: (i, 0))],
            out_specs=pl.BlockSpec((tm, k), lambda i: (i, 0)),
        ),
        compiler_params=pltpu.CompilerParams(dimension_semantics=("parallel",)),
    )(x_flat)
    if k_pad != k:
        xdq = jnp.pad(xdq, ((0, 0), (0, k_pad - k)))

    # --- Pass 2: tiled int8-weight dequant + bf16 matmul ---------------------
    if scales_blocked:
        ws_spec = pl.BlockSpec((gpb, tn), lambda i, j, kk: (kk, j))
        wz_spec = pl.BlockSpec((gpb, tn), lambda i, j, kk: (kk, j))
    else:
        ws_spec = pl.BlockSpec((G_pad, tn), lambda i, j, kk: (0, j))
        wz_spec = pl.BlockSpec((G_pad, tn), lambda i, j, kk: (0, j))

    out = pl.pallas_call(
        functools.partial(_wdq_matmul_kernel, group_size=group_size,
                          scales_blocked=scales_blocked),
        out_shape=jax.ShapeDtypeStruct((M_pad, n_pad), jnp.float32),
        grid_spec=pltpu.PrefetchScalarGridSpec(
            num_scalar_prefetch=0,
            grid=(M_pad // tm, n_pad // tn, k_pad // tk),
            in_specs=[
                pl.BlockSpec((tm, tk), lambda i, j, kk: (i, kk)),       # act
                pl.BlockSpec((tk, tn), lambda i, j, kk: (kk, j)),       # wq i8
                ws_spec,                                                # scales
                wz_spec,                                                # zeros
            ],
            out_specs=pl.BlockSpec((tm, tn), lambda i, j, kk: (i, j)),
            scratch_shapes=[pltpu.VMEM((tm, tn), jnp.float32)],
        ),
        compiler_params=pltpu.CompilerParams(
            dimension_semantics=("parallel", "parallel", "arbitrary")),
    )(xdq, wq_t, ws_t, wz_t)

    return out[:M, :n].reshape(*lead, n)


# ---------------------------------------------------------------------------
# Plain-JAX reference (f32), for correctness check only.
# ---------------------------------------------------------------------------
def _reference(x, wq, ws, wz, group_size):
    n, k = wq.shape
    wq_f = wq.astype(jnp.float32)
    wdq = ((wq_f.reshape(n, -1, group_size) - wz[:, :, None])
           * ws[:, :, None]).reshape(n, k)
    lead = x.shape[:-1]
    x2 = x.reshape(-1, k).astype(jnp.float32)
    rmin = x2.min(axis=1, keepdims=True)
    rmax = x2.max(axis=1, keepdims=True)
    s = (rmax - rmin) / 255.0
    s_safe = jnp.where(s == 0, 1.0, s)
    z = -128.0 - jnp.round(rmin / s_safe)
    xq = jnp.clip(jnp.round(x2 / s_safe + z), -128.0, 127.0)
    xdq = (xq - z) * s
    return (xdq @ wdq.T).reshape(*lead, n)


if __name__ == "__main__":
    # Small deterministic problem: n=k=256, group_size=64, nbit=4,
    # activations (2, 8, 256) -> output (2, 8, 256).
    nbit = 4
    group_size = 64
    n, k = 256, 256
    B, m = 2, 8
    has_weight_zeros = True

    key = jax.random.PRNGKey(0)
    kw, kx = jax.random.split(key)
    weights = jax.random.normal(kw, (n, k), dtype=jnp.float32)
    x = jax.random.normal(kx, (B, m, k), dtype=jnp.float32)

    wq, ws, wz = quantize_weights(weights, group_size, nbit, has_weight_zeros)
    packed = pack_weights(wq, ws, wz, group_size)

    out = int8_dynact_intx_weight_linear(x, packed)
    out = jax.block_until_ready(out)

    ref = _reference(x, wq, ws, wz, group_size)
    assert out.shape == (B, m, n)
    # bf16 MXU operands (f32 accumulate) vs pure-f32 reference: tolerance is
    # set accordingly (quantization error already dominates).
    np.testing.assert_allclose(np.asarray(out), np.asarray(ref),
                               rtol=3e-2, atol=0.5)
    print("KERNEL_OK")
</pallas_src>

<mosaic_0001>
module attributes {stable_mosaic.version = 11 : i64} {
  func.func @_act_quant_kernel(%arg0: i32, %arg1: memref<16x256xf32, #tpu.memory_space<vmem>>, %arg2: memref<16x256xbf16, #tpu.memory_space<vmem>>) attributes {dimension_semantics = [#tpu.dimension_semantics<parallel>], iteration_bounds = array<i64: 1>, scalar_prefetch = 0 : i64, scratch_operands = 0 : i64, tpu.core_type = #tpu.core_type<tc>, window_params = [{transform_indices = @transform_0, window_bounds = array<i64: 16, 256>}, {transform_indices = @transform_1, window_bounds = array<i64: 16, 256>}]} {
    %c0 = arith.constant 0 : index
    %c0_0 = arith.constant 0 : index
    %0 = vector.load %arg1[%c0, %c0_0] : memref<16x256xf32, #tpu.memory_space<vmem>>, vector<16x256xf32>
    %cst = arith.constant dense<0x7F800000> : vector<16xf32>
    %1 = vector.multi_reduction <minimumf>, %0, %cst [1] : vector<16x256xf32> to vector<16xf32>
    %2 = vector.shape_cast %1 : vector<16xf32> to vector<16x1xf32>
    %cst_1 = arith.constant dense<0xFF800000> : vector<16xf32>
    %3 = vector.multi_reduction <maximumf>, %0, %cst_1 [1] : vector<16x256xf32> to vector<16xf32>
    %4 = vector.shape_cast %3 : vector<16xf32> to vector<16x1xf32>
    %5 = arith.subf %4, %2 : vector<16x1xf32>
    %cst_2 = arith.constant 0.00392156886 : f32
    %6 = vector.broadcast %cst_2 : f32 to vector<16x1xf32>
    %7 = arith.mulf %5, %6 : vector<16x1xf32>
    %cst_3 = arith.constant 0.000000e+00 : f32
    %8 = vector.broadcast %cst_3 : f32 to vector<16x1xf32>
    %9 = arith.cmpf oeq, %7, %8 : vector<16x1xf32>
    %cst_4 = arith.constant 1.000000e+00 : f32
    %10 = vector.broadcast %cst_4 : f32 to vector<16x1xf32>
    %11 = arith.select %9, %10, %7 : vector<16x1xi1>, vector<16x1xf32>
    %cst_5 = arith.constant 1.000000e+00 : f32
    %12 = vector.broadcast %cst_5 : f32 to vector<16x1xf32>
    %13 = arith.divf %12, %11 : vector<16x1xf32>
    %14 = arith.mulf %2, %13 : vector<16x1xf32>
    %15 = math.roundeven %14 : vector<16x1xf32>
    %cst_6 = arith.constant -1.280000e+02 : f32
    %16 = vector.broadcast %cst_6 : f32 to vector<16x1xf32>
    %17 = arith.subf %16, %15 : vector<16x1xf32>
    %18 = vector.broadcast %13 : vector<16x1xf32> to vector<16x256xf32>
    %19 = arith.mulf %0, %18 : vector<16x256xf32>
    %20 = vector.broadcast %17 : vector<16x1xf32> to vector<16x256xf32>
    %21 = arith.addf %19, %20 : vector<16x256xf32>
    %22 = math.roundeven %21 : vector<16x256xf32>
    %cst_7 = arith.constant -1.280000e+02 : f32
    %cst_8 = arith.constant 1.270000e+02 : f32
    %23 = vector.broadcast %cst_7 : f32 to vector<16x256xf32>
    %24 = arith.maximumf %23, %22 : vector<16x256xf32>
    %25 = vector.broadcast %cst_8 : f32 to vector<16x256xf32>
    %26 = arith.minimumf %25, %24 : vector<16x256xf32>
    %27 = vector.broadcast %17 : vector<16x1xf32> to vector<16x256xf32>
    %28 = arith.subf %26, %27 : vector<16x256xf32>
    %29 = vector.broadcast %7 : vector<16x1xf32> to vector<16x256xf32>
    %30 = arith.mulf %28, %29 : vector<16x256xf32>
    %31 = arith.truncf %30 : vector<16x256xf32> to vector<16x256xbf16>
    %c0_9 = arith.constant 0 : index
    %c0_10 = arith.constant 0 : index
    %32 = vector.load %arg2[%c0_9, %c0_10] : memref<16x256xbf16, #tpu.memory_space<vmem>>, vector<16x256xbf16>
    tpu.vector_store %arg2[%c0_9, %c0_10], %31 {strides = array<i32>} : memref<16x256xbf16, #tpu.memory_space<vmem>>, vector<16x256xbf16>,
    return
  }
  func.func @transform_0(%arg0: i32) -> (i32, i32) {
    %c0_i32 = arith.constant 0 : i32
    %c0_i32_0 = arith.constant 0 : i32
    return %arg0, %c0_i32 : i32, i32
  }
  func.func @transform_1(%arg0: i32) -> (i32, i32) {
    %c0_i32 = arith.constant 0 : i32
    %c0_i32_0 = arith.constant 0 : i32
    return %arg0, %c0_i32 : i32, i32
  }
}

</mosaic_0001>

<llo_original>
// kernel: tpu_custom_call.1
$region0: #{tpu_custom_call.1}
  #allocation0 [shape = 'u32[]', space=smem, size = 0x4, offset = 0x4, fixed_abs, tag = 'smem constant byte address 0x4 - core index']
  #allocation1 [shape = 'u32[144,128]{1,0:T(1,128)}', space=vmem, size = 0x12000, scoped, tag = 'internal scratch']
  %s0 = inlined_call_operand.hbm [shape: f32[16,256], index: 0, kind: input, shape index: {}]
  %s1 = inlined_call_operand.hbm [shape: bf16[16,256], index: 1, kind: output, shape index: {}]
  %s2 = sld [smem:[#allocation0]]
  $region18: #{tpu_custom_call.1} parent=0
    _
  %s4 = ssub.s32 1, %s2
  %s5 = scalar_select 0, %s4, %s2
  $region1: #{tpu_custom_call.1} parent=0
    #allocation2 [shape = 'u8[16384]{0}', space=vmem, size = 0x4000, scoped, tag = 'input window, operand 0, single buffered']
    #allocation3 [shape = 's32[1]{0}', space=sflag, size = 0x4, scoped, tag = 'scoped memory for tpu_custom_call.1']
    #allocation4 [shape = 's32[1]{0}', space=sflag, size = 0x4, scoped, tag = 'scoped memory for tpu_custom_call.1']
    #allocation5 [shape = 'u8[8192]{0}', space=vmem, size = 0x2000, scoped, tag = 'output window, operand 0, single buffered']
    %6 = vsyncpa [#allocation3], 0
    %7 = vsyncpa [#allocation4], 0
    // Predicated region
    $region2: #{tpu_custom_call.1} parent=1 // pred_check
      _
    $region3: #{tpu_custom_call.1} parent=1 // pred_check_branch
      %9 = sbr.rel (0) target = $region5
    $region4: #{tpu_custom_call.1} parent=1 // pred_region
      %s11 = ssub.s32 512, 512
      %12 = vsyncadd [#allocation3], %s11
      %s13 = sshll.u32 [#allocation2], 4
      %s14 = int_to_ptr.vmem [resolvable:$true] %s13
      %19 = dma.hbm_to_vmem [thread:$0]  %s0, 512, %s14, [#allocation3], 256, 256, 16
    $region5: #{tpu_custom_call.1} parent=1 // pred_fallthru
      _
    // Predicated region
    $region6: #{tpu_custom_call.1} parent=1 // pred_check
      _
    $region7: #{tpu_custom_call.1} parent=1 // pred_check_branch
      %21 = sbr.rel (0) target = $region9
    $region8: #{tpu_custom_call.1} parent=1 // pred_region
      %22 = dma.done [#allocation3], 512
    $region9: #{tpu_custom_call.1} parent=1 // pred_fallthru
      _
    %v23 = vld [vmem:[#allocation2] sm:$0xff]
    %v24 = vld [vmem:[#allocation2 + $0x8] sm:$0xff]
    %v25 = vld [vmem:[#allocation2 + $0x10] sm:$0xff]
    %v26 = vld [vmem:[#allocation2 + $0x18] sm:$0xff]
    %v27 = vmin.f32 %v23, %v24
    %28 = vmin.xlane.f32.xlu0 %v27
    %v29 = vpop.xlane.xlu0 %28
    %v30 = vmin.f32 %v25, %v26
    %31 = vmin.xlane.f32.xlu0 %v30
    %v32 = vpop.xlane.xlu0 %31
    %v33 = vmax.f32 %v23, %v24
    %34 = vmax.xlane.f32.xlu0 %v33
    %v35 = vpop.xlane.xlu0 %34
    %v36 = vmax.f32 %v25, %v26
    %37 = vmax.xlane.f32.xlu0 %v36
    %v38 = vpop.xlane.xlu0 %37
    %v39 = vsub.f32 %v35, %v29
    %v40 = vsub.f32 %v38, %v32
    %v41 = vmul.f32 %v39, 0.003921569
    %v42 = vmul.f32 %v40, 0.003921569
    %vm43 = vcmp.eq.f32.partialorder %v41, 0.0
    %vm44 = vcmp.eq.f32.partialorder %v42, 0.0
    %v45 = vsel %vm43, 1.0, %v41
    %v46 = vsel %vm44, 1.0, %v42
    %v47 = vrcp.pop %v45
    %v48 = vmul.f32 1.0, %v47
    %v49 = vrcp.pop %v46
    %v50 = vmul.f32 1.0, %v49
    %v51 = vmul.f32 %v29, %v48
    %v52 = vmul.f32 %v32, %v50
    %v53 = vround.ne.pseudo %v51
    %v54 = vround.ne.pseudo %v52
    %v55 = vsub.f32 -128.0, %v53
    %v56 = vsub.f32 -128.0, %v54
    %v57 = vmul.f32 %v23, %v48
    %v58 = vmul.f32 %v24, %v48
    %v59 = vmul.f32 %v25, %v50
    %v60 = vmul.f32 %v26, %v50
    %v61 = vadd.f32 %v57, %v55
    %v62 = vadd.f32 %v58, %v55
    %v63 = vadd.f32 %v59, %v56
    %v64 = vadd.f32 %v60, %v56
    %v65 = vround.ne.pseudo %v61
    %v66 = vround.ne.pseudo %v62
    %v67 = vround.ne.pseudo %v63
    %v68 = vround.ne.pseudo %v64
    %v69 = vmax.f32 %v65, -128.0
    %v70 = vmax.f32 %v66, -128.0
    %v71 = vmax.f32 %v67, -128.0
    %v72 = vmax.f32 %v68, -128.0
    %v73 = vmin.f32 %v69, 127.0
    %v74 = vmin.f32 %v70, 127.0
    %v75 = vmin.f32 %v71, 127.0
    %v76 = vmin.f32 %v72, 127.0
    %v77 = vsub.f32 %v73, %v55
    %v78 = vsub.f32 %v74, %v55
    %v79 = vsub.f32 %v75, %v56
    %v80 = vsub.f32 %v76, %v56
    %v81 = vmul.f32 %v77, %v41
    %v82 = vmul.f32 %v78, %v41
    %v83 = vmul.f32 %v79, %v42
    %v84 = vmul.f32 %v80, %v42
    %v85 = vpack.c.bf16 %v83, %v81
    %v86 = vpack.c.bf16 %v84, %v82
    %v89 = vunpack.c.l.b16 %v85
    %v90 = vunpack.c.l.b16 %v86
    %v91 = vunpack.c.h.b16 %v85
    %v92 = vunpack.c.h.b16 %v86
    %v93 = vpack.c.b16 %v90, %v89
    %v94 = vpack.c.b16 %v92, %v91
    %97 = vst [vmem:[#allocation5] sm:$0xff] %v93
    %98 = vst [vmem:[#allocation5 + $0x8] sm:$0xff] %v94
    // Predicated region
    $region10: #{tpu_custom_call.1} parent=1 // pred_check
      _
    $region11: #{tpu_custom_call.1} parent=1 // pred_check_branch
      %100 = sbr.rel (0) target = $region13
    $region12: #{tpu_custom_call.1} parent=1 // pred_region
      %s102 = ssub.s32 256, 256
      %103 = vsyncadd [#allocation4], %s102
      %s104 = sshll.u32 [#allocation5], 4
      %s105 = int_to_ptr.vmem [resolvable:$true] %s104
      %110 = dma.vmem_to_hbm [thread:$0]  %s105, 256, %s1, [#allocation4], 128, 128, 8
    $region13: #{tpu_custom_call.1} parent=1 // pred_fallthru
      _
    // Predicated region
    $region14: #{tpu_custom_call.1} parent=1 // pred_check
      _
    $region15: #{tpu_custom_call.1} parent=1 // pred_check_branch
      %112 = sbr.rel (0) target = $region17
    $region16: #{tpu_custom_call.1} parent=1 // pred_region
      %113 = dma.done [#allocation4], 256
    $region17: #{tpu_custom_call.1} parent=1 // pred_fallthru
      _
    %114 = vsyncpa [#allocation3], 1
    %115 = vsyncpa [#allocation4], 1

</llo_original>
